<compile_context>
chip_gen: v6e
topology: v6e:2x2x1
jax: 0.10.0
libtpu: 0.0.40
codegen_flags: <defaults>
</compile_context>

<pallas_src>
import functools

import jax
import jax.numpy as jnp
from jax.experimental import pallas as pl
from jax.experimental.pallas import tpu as pltpu


def _fm_kernel(x_ref, wv_ref, s_ref, b_ref, o_ref):
    """One batch tile: o = x@w + bias + 0.5*sum((x@v)^2) - 0.5*(x^2)@rowsum(v^2)."""
    x = x_ref[...]
    xf = x.astype(jnp.float32)

    # Fused linear + factor matmul: x @ [w | v].
    #   column 0     -> x @ w   (linear part, pre-bias)
    #   columns 1..k -> x @ v   (factor interactions)
    xwv = jnp.dot(x.astype(wv_ref.dtype), wv_ref[...],
                  preferred_element_type=jnp.float32)            # (tb, 1+k)
    lin = xwv[:, 0:1]                                            # (tb, 1)

    # sum_j (x@v)_j^2 == sum_j xwv_j^2 - (x@w)^2  (avoids unaligned lane slice).
    total_sq = jnp.sum(xwv * xwv, axis=1, keepdims=True)         # (tb, 1)
    sum_xv_sq = total_sq - lin * lin                             # (tb, 1)

    # 0.5 * (x^2) @ rowsum(v^2); s_ref already carries the 0.5 factor (f32).
    xsq = xf * xf                                                # f32 VPU (v5e-safe)
    x2s_half = jnp.dot(xsq.astype(s_ref.dtype), s_ref[...],
                       preferred_element_type=jnp.float32)       # (tb, 1)

    out = lin + b_ref[0, 0] + 0.5 * sum_xv_sq - x2s_half         # (tb, 1) f32
    o_ref[...] = out.astype(o_ref.dtype)


def _pick_tiling(batch):
    """Choose (tile_b, padded_batch)."""
    if batch <= 512:
        b_pad = max(8, ((batch + 7) // 8) * 8)   # sublane-aligned single tile
        return b_pad, b_pad
    # Large batches: 512-row tiles (>= MXU M dim; 64 KiB x-tile at p=32) and a
    # grid of length >= 2 so both v7x TensorCores get work via "parallel".
    tb = 512
    b_pad = ((batch + tb - 1) // tb) * tb
    return tb, b_pad


@functools.partial(jax.jit, static_argnames=("compute_dtype",))
def factorization_machine(x, v, w, bias, *, compute_dtype=jnp.float32):
    """FM forward. x: (B, p); v: (p, k); w: (p, 1); bias: (1, 1) or (1,).

    Returns (B, 1), matching the torch module in eval mode.
    compute_dtype=jnp.bfloat16 feeds the MXU in bf16 (f32 accumulation).
    """
    batch, p = x.shape
    k = v.shape[1]

    # One-time parameter prep (tiny, outside the per-tile grid body):
    wv = jnp.concatenate([w.astype(jnp.float32), v.astype(jnp.float32)],
                         axis=1).astype(compute_dtype)           # (p, 1+k)
    s_half = 0.5 * jnp.sum(v.astype(jnp.float32) ** 2, axis=1,
                           keepdims=True)                        # (p, 1), f32
    bias_sc = jnp.asarray(bias, jnp.float32).reshape(1, 1)       # SMEM scalar

    tb, b_pad = _pick_tiling(batch)
    if b_pad != batch:
        x = jnp.pad(x, ((0, b_pad - batch), (0, 0)))
    grid = (b_pad // tb,)

    in_specs = [
        pl.BlockSpec((tb, p), lambda i: (i, 0)),                 # x tile
        pl.BlockSpec((p, k + 1), lambda i: (0, 0)),              # [w | v], resident
        pl.BlockSpec((p, 1), lambda i: (0, 0)),                  # 0.5*rowsum(v^2)
        pl.BlockSpec(memory_space=pltpu.MemorySpace.SMEM),       # bias scalar
    ]
    out_spec = pl.BlockSpec((tb, 1), lambda i: (i, 0))           # (B_pad, 1) column

    # NOTE(v7x, large p): at p=32 everything is tiny; for very large p, add a
    # p-reduction grid axis ("arbitrary") with an f32 VMEM accumulator and set
    # vmem_limit_bytes to stay inside the 64 MiB VMEM budget.
    compiler_params = pltpu.CompilerParams(
        dimension_semantics=("parallel",))
    cost = pl.CostEstimate(
        flops=2 * b_pad * p * (k + 2),
        transcendentals=0,
        bytes_accessed=(b_pad * p * x.dtype.itemsize
                        + p * (k + 1) * wv.dtype.itemsize
                        + p * 4 + b_pad * x.dtype.itemsize),
    )

    grid_spec = pltpu.PrefetchScalarGridSpec(
        num_scalar_prefetch=0,
        grid=grid,
        in_specs=in_specs,
        out_specs=out_spec,
    )
    out = pl.pallas_call(
        _fm_kernel,
        out_shape=jax.ShapeDtypeStruct((b_pad, 1), x.dtype),
        grid_spec=grid_spec,
        compiler_params=compiler_params,
        cost_estimate=cost,
    )(x, wv, s_half, bias_sc)

    return out[:batch]


def factorization_machine_ref(x, v, w, bias):
    linear_part = x @ w + jnp.reshape(bias, (1, 1))
    inter1 = (x @ v) ** 2
    inter2 = (x ** 2) @ (v ** 2)
    pair = jnp.sum(inter1 - inter2, axis=1, keepdims=True)
    return linear_part + 0.5 * pair


if __name__ == "__main__":
    # Small deterministic setup: p = 32 features, k = 16 latent dims, B = 16.
    B, P, K = 16, 32, 16
    key = jax.random.PRNGKey(0)
    kx, kv, kw, kb = jax.random.split(key, 4)

    x = jax.random.normal(kx, (B, P), dtype=jnp.float32)
    # Parameter init (same shapes as the torch module):
    #   v = torch.rand(p, k) / 10 ; linear = nn.Linear(p, 1) (weight transposed here)
    v = jax.random.uniform(kv, (P, K), dtype=jnp.float32) / 10.0
    bound = 1.0 / float(jnp.sqrt(P))
    w = jax.random.uniform(kw, (P, 1), dtype=jnp.float32, minval=-bound, maxval=bound)
    bias = jax.random.uniform(kb, (1, 1), dtype=jnp.float32, minval=-bound, maxval=bound)

    ref = factorization_machine_ref(x, v, w, bias)

    # f32 path.
    out = jax.block_until_ready(factorization_machine(x, v, w, bias))
    assert out.shape == (B, 1)
    assert jnp.allclose(out, ref, atol=1e-4, rtol=1e-4), "f32 kernel mismatch"

    # bf16 MXU-operand path (v5e/v6e/v7x optimization; f32 accumulation).
    out_bf16 = jax.block_until_ready(
        factorization_machine(x, v, w, bias, compute_dtype=jnp.bfloat16))
    assert out_bf16.shape == (B, 1)
    assert jnp.allclose(out_bf16, ref, atol=1e-1, rtol=1e-1), "bf16 kernel mismatch"

    # Ragged, multi-tile batch (exercises padding + grid > 1 + parallel axis).
    B2 = 1030
    x2 = jax.random.normal(jax.random.PRNGKey(1), (B2, P), dtype=jnp.float32)
    out2 = jax.block_until_ready(factorization_machine(x2, v, w, bias))
    ref2 = factorization_machine_ref(x2, v, w, bias)
    assert out2.shape == (B2, 1)
    assert jnp.allclose(out2, ref2, atol=1e-4, rtol=1e-4), "multi-tile mismatch"

    print("KERNEL_OK")
</pallas_src>

<mosaic_0001>
module attributes {stable_mosaic.version = 11 : i64} {
  func.func @_fm_kernel(%arg0: i32, %arg1: memref<16x32xf32, #tpu.memory_space<vmem>>, %arg2: memref<32x17xf32, #tpu.memory_space<vmem>>, %arg3: memref<32x1xf32, #tpu.memory_space<vmem>>, %arg4: memref<1x1xf32, #tpu.memory_space<smem>>, %arg5: memref<16x1xf32, #tpu.memory_space<vmem>>) attributes {dimension_semantics = [#tpu.dimension_semantics<parallel>], iteration_bounds = array<i64: 1>, scalar_prefetch = 0 : i64, scratch_operands = 0 : i64, tpu.core_type = #tpu.core_type<tc>, window_params = [{transform_indices = @transform_0, window_bounds = array<i64: 16, 32>}, {pipeline_mode = #tpu.pipeline_mode<synchronous>, transform_indices = @transform_1, window_bounds = array<i64: 32, 17>}, {pipeline_mode = #tpu.pipeline_mode<synchronous>, transform_indices = @transform_2, window_bounds = array<i64: 32, 1>}, {transform_indices = @transform_3, window_bounds = array<i64: 1, 1>}, {transform_indices = @transform_4, window_bounds = array<i64: 16, 1>}]} {
    %c0 = arith.constant 0 : index
    %c0_0 = arith.constant 0 : index
    %0 = vector.load %arg1[%c0, %c0_0] : memref<16x32xf32, #tpu.memory_space<vmem>>, vector<16x32xf32>
    %c0_1 = arith.constant 0 : index
    %c0_2 = arith.constant 0 : index
    %1 = vector.load %arg2[%c0_1, %c0_2] : memref<32x17xf32, #tpu.memory_space<vmem>>, vector<32x17xf32>
    %cst = arith.constant dense<0.000000e+00> : vector<16x17xf32>
    %2 = tpu.matmul %0, %1, %cst {dimension_numbers = #tpu.dot_dimension_numbers<[1], [0], [0], [1], [0, 0, 1, 1], [], []>} : vector<16x32xf32>, vector<32x17xf32>, vector<16x17xf32> -> vector<16x17xf32>
    %3 = vector.extract_strided_slice %2 {offsets = [0, 0], sizes = [16, 1], strides = [1, 1]} : vector<16x17xf32> to vector<16x1xf32>
    %4 = arith.mulf %2, %2 : vector<16x17xf32>
    %cst_3 = arith.constant dense<0.000000e+00> : vector<16xf32>
    %5 = vector.multi_reduction <add>, %4, %cst_3 [1] : vector<16x17xf32> to vector<16xf32>
    %6 = vector.shape_cast %5 : vector<16xf32> to vector<16x1xf32>
    %7 = arith.mulf %3, %3 : vector<16x1xf32>
    %8 = arith.subf %6, %7 : vector<16x1xf32>
    %9 = arith.mulf %0, %0 : vector<16x32xf32>
    %c0_4 = arith.constant 0 : index
    %c0_5 = arith.constant 0 : index
    %10 = vector.load %arg3[%c0_4, %c0_5] : memref<32x1xf32, #tpu.memory_space<vmem>>, vector<32x1xf32>
    %cst_6 = arith.constant dense<0.000000e+00> : vector<16x1xf32>
    %11 = tpu.matmul %9, %10, %cst_6 {dimension_numbers = #tpu.dot_dimension_numbers<[1], [0], [0], [1], [0, 0, 1, 1], [], []>} : vector<16x32xf32>, vector<32x1xf32>, vector<16x1xf32> -> vector<16x1xf32>
    %c0_7 = arith.constant 0 : index
    %c0_8 = arith.constant 0 : index
    %12 = memref.load %arg4[%c0_7, %c0_8] : memref<1x1xf32, #tpu.memory_space<smem>>
    %13 = vector.broadcast %12 : f32 to vector<16x1xf32>
    %14 = arith.addf %3, %13 : vector<16x1xf32>
    %cst_9 = arith.constant 5.000000e-01 : f32
    %15 = vector.broadcast %cst_9 : f32 to vector<16x1xf32>
    %16 = arith.mulf %15, %8 : vector<16x1xf32>
    %17 = arith.addf %14, %16 : vector<16x1xf32>
    %18 = arith.subf %17, %11 : vector<16x1xf32>
    %c0_10 = arith.constant 0 : index
    %c0_11 = arith.constant 0 : index
    %19 = vector.load %arg5[%c0_10, %c0_11] : memref<16x1xf32, #tpu.memory_space<vmem>>, vector<16x1xf32>
    tpu.vector_store %arg5[%c0_10, %c0_11], %18 {strides = array<i32>} : memref<16x1xf32, #tpu.memory_space<vmem>>, vector<16x1xf32>,
    return
  }
  func.func @transform_0(%arg0: i32) -> (i32, i32) {
    %c0_i32 = arith.constant 0 : i32
    %c0_i32_0 = arith.constant 0 : i32
    return %arg0, %c0_i32 : i32, i32
  }
  func.func @transform_1(%arg0: i32) -> (i32, i32) {
    %c0_i32 = arith.constant 0 : i32
    %c0_i32_0 = arith.constant 0 : i32
    %c0_i32_1 = arith.constant 0 : i32
    return %c0_i32, %c0_i32_0 : i32, i32
  }
  func.func @transform_2(%arg0: i32) -> (i32, i32) {
    %c0_i32 = arith.constant 0 : i32
    %c0_i32_0 = arith.constant 0 : i32
    %c0_i32_1 = arith.constant 0 : i32
    return %c0_i32, %c0_i32_0 : i32, i32
  }
  func.func @transform_3(%arg0: i32) -> (i32, i32) {
    %c0_i32 = arith.constant 0 : i32
    %c0_i32_0 = arith.constant 0 : i32
    %c0_i32_1 = arith.constant 0 : i32
    return %c0_i32, %c0_i32_0 : i32, i32
  }
  func.func @transform_4(%arg0: i32) -> (i32, i32) {
    %c0_i32 = arith.constant 0 : i32
    %c0_i32_0 = arith.constant 0 : i32
    return %arg0, %c0_i32 : i32, i32
  }
}

</mosaic_0001>

<llo_original>
// kernel: factorization_machine.1
$region0: #{factorization_machine.1}
  #allocation0 [shape = 'u32[]', space=smem, size = 0x4, offset = 0x4, fixed_abs, tag = 'smem constant byte address 0x4 - core index']
  #allocation1 [shape = 'u32[144,128]{1,0:T(1,128)}', space=vmem, size = 0x12000, scoped, tag = 'internal scratch']
  #allocation2 [shape = 'f32[1,1]{1,0:T(1,128)S(6)}', space=smem, size = 0x200, scoped, tag = 'scoped memory for factorization_machine.1']
  %s0 = inlined_call_operand.vmem [shape: f32[16,32], index: 0, kind: input, shape index: {}]
  %s1 = inlined_call_operand.vmem [shape: f32[32,17], index: 1, kind: input, shape index: {}]
  %s2 = inlined_call_operand.vmem [shape: f32[32,1], index: 2, kind: input, shape index: {}]
  %s3 = inlined_call_operand.<no memory space> [shape: f32[1,1], index: 3, kind: input, shape index: {}]
  %s4 = inlined_call_operand.vmem [shape: f32[16,1], index: 4, kind: output, shape index: {}]
  %s5 = sld [smem:[#allocation0]]
  $region26: #{factorization_machine.1} parent=0
    _
  %s7 = ssub.s32 1, %s5
  %s8 = scalar_select 0, %s7, %s5
  %9 = sst [smem:[#allocation2]] %s3
  // Predicated region
  $region2: #{factorization_machine.1} parent=0 // pred_check
    _
  $region3: #{factorization_machine.1} parent=0 // pred_check_branch
    %11 = sbr.rel (0) target = $region5
  $region4: #{factorization_machine.1} parent=0 // pred_region
    _
  $region5: #{factorization_machine.1} parent=0 // pred_fallthru
    _
  // Predicated region
  $region6: #{factorization_machine.1} parent=0 // pred_check
    _
  $region7: #{factorization_machine.1} parent=0 // pred_check_branch
    %13 = sbr.rel (0) target = $region9
  $region8: #{factorization_machine.1} parent=0 // pred_region
    _
  $region9: #{factorization_machine.1} parent=0 // pred_fallthru
    _
  // Predicated region
  $region10: #{factorization_machine.1} parent=0 // pred_check
    _
  $region11: #{factorization_machine.1} parent=0 // pred_check_branch
    %15 = sbr.rel (0) target = $region13
  $region12: #{factorization_machine.1} parent=0 // pred_region
    _
  $region13: #{factorization_machine.1} parent=0 // pred_fallthru
    _
  // Predicated region
  $region14: #{factorization_machine.1} parent=0 // pred_check
    _
  $region15: #{factorization_machine.1} parent=0 // pred_check_branch
    %17 = sbr.rel (0) target = $region17
  $region16: #{factorization_machine.1} parent=0 // pred_region
    _
  $region17: #{factorization_machine.1} parent=0 // pred_fallthru
    _
  %v18 = vld [vmem:[%s0] sm:$0xff]
  %v19 = vld [vmem:[%s0 + $0x8] sm:$0xff]
  %v20 = vld [vmem:[%s1] sm:$0xff]
  %v21 = vld [vmem:[%s1 + $0x8] sm:$0xff]
  %v22 = vld [vmem:[%s1 + $0x10] sm:$0xff]
  %v23 = vld [vmem:[%s1 + $0x18] sm:$0xff]
  %vm24 = vcmask 261120
  %v26 = vsel %vm24, %v18, 0
  %v29 = vsel %vm24, %v19, 0
  %31 = vmatprep.subr.mxu0 0.0
  %32 = vmatpush1.msra.mxu0 0.0
  %33 = vmatprep.subr.mxu0 0.0
  %34 = vmatpush1.msra.mxu0 0.0
  %35 = vmatprep.subr.mxu0 0.0
  %36 = vmatpush1.msra.mxu0 0.0
  %37 = vmatprep.subr.mxu0 0.0
  %38 = vmatpush1.msra.mxu0 0.0
  %39 = vmatprep.subr.mxu0 0.0
  %40 = vmatpush1.msra.mxu0 0.0
  %41 = vmatprep.subr.mxu0 0.0
  %42 = vmatpush1.msra.mxu0 0.0
  %43 = vmatprep.subr.mxu0 0.0
  %44 = vmatpush1.msra.mxu0 0.0
  %45 = vmatprep.subr.mxu0 0.0
  %46 = vmatpush1.msra.mxu0 0.0
  %47 = vmatprep.subr.mxu0 0.0
  %48 = vmatpush1.msra.mxu0 0.0
  %49 = vmatprep.subr.mxu0 0.0
  %50 = vmatpush1.msra.mxu0 0.0
  %51 = vmatprep.subr.mxu0 0.0
  %52 = vmatpush1.msra.mxu0 0.0
  %53 = vmatprep.subr.mxu0 0.0
  %54 = vmatpush1.msra.mxu0 0.0
  %55 = vmatprep.subr.mxu0 0.0
  %56 = vmatpush1.msra.mxu0 %v23
  %57 = vmatprep.subr.mxu0 0.0
  %58 = vmatpush1.msra.mxu0 %v22
  %59 = vmatprep.subr.mxu0 0.0
  %60 = vmatpush1.msra.mxu0 %v21
  %61 = vmatprep.subr.mxu0 0.0
  %62 = vmatpush1.msra.mxu0 %v20
  %63 = vmatprep.subr.mxu0 0.0
  %64 = vmatpush2.msra.mxu0 0.0
  %65 = vmatprep.subr.mxu0 0.0
  %66 = vmatpush2.msra.mxu0 0.0
  %67 = vmatprep.subr.mxu0 0.0
  %68 = vmatpush2.msra.mxu0 0.0
  %69 = vmatprep.subr.mxu0 0.0
  %70 = vmatpush2.msra.mxu0 0.0
  %71 = vmatprep.subr.mxu0 0.0
  %72 = vmatpush2.msra.mxu0 0.0
  %73 = vmatprep.subr.mxu0 0.0
  %74 = vmatpush2.msra.mxu0 0.0
  %75 = vmatprep.subr.mxu0 0.0
  %76 = vmatpush2.msra.mxu0 0.0
  %77 = vmatprep.subr.mxu0 0.0
  %78 = vmatpush2.msra.mxu0 0.0
  %79 = vmatprep.subr.mxu0 0.0
  %80 = vmatpush2.msra.mxu0 0.0
  %81 = vmatprep.subr.mxu0 0.0
  %82 = vmatpush2.msra.mxu0 0.0
  %83 = vmatprep.subr.mxu0 0.0
  %84 = vmatpush2.msra.mxu0 0.0
  %85 = vmatprep.subr.mxu0 0.0
  %86 = vmatpush2.msra.mxu0 0.0
  %87 = vmatprep.subr.mxu0 0.0
  %88 = vmatpush2.msra.mxu0 0.0
  %89 = vmatprep.subr.mxu0 0.0
  %90 = vmatpush2.msra.mxu0 0.0
  %91 = vmatprep.subr.mxu0 0.0
  %92 = vmatpush2.msra.mxu0 0.0
  %93 = vmatprep.subr.mxu0 0.0
  %94 = vmatpush2.msra.mxu0 0.0
  %95 = vmatprep.mubr.f32.mxu0 0.0
  %96 = vmatmul.mubr.f32.gmra.mxu0 %v26
  %v97 = vpop.f32.mrf.mxu0
  %v98 = vadd.f32 0.0, %v97
  %v99 = vpop.f32.mrf.mxu0
  %100 = vmatprep.mubr.f32.mxu0 0.0
  %101 = vmatmul.mubr.f32.gmra.mxu0 %v29
  %v102 = vpop.f32.mrf.mxu0
  %v103 = vadd.f32 0.0, %v102
  %v104 = vpop.f32.mrf.mxu0
  %105 = vdwg.mxu0
  %v106 = vmul.f32 %v98, %v98
  %v107 = vmul.f32 %v103, %v103
  %vm108 = vcmask 138240
  %v109 = vsel %vm108, %v106, 0.0
  %110 = vadd.xlane.f32.xlu0 %v109
  %v111 = vpop.xlane.xlu0 %110
  %v112 = vsel %vm108, %v107, 0.0
  %113 = vadd.xlane.f32.xlu0 %v112
  %v114 = vpop.xlane.xlu0 %113
  %v115 = vsub.f32 %v111, %v106
  %v116 = vsub.f32 %v114, %v107
  %v117 = vmul.f32 %v18, %v18
  %v118 = vmul.f32 %v19, %v19
  %v119 = vld [vmem:[%s2] sm:$0xff]
  %v120 = vld [vmem:[%s2 + $0x8] sm:$0xff]
  %v121 = vld [vmem:[%s2 + $0x10] sm:$0xff]
  %v122 = vld [vmem:[%s2 + $0x18] sm:$0xff]
  %v124 = vsel %vm24, %v117, 0
  %v127 = vsel %vm24, %v118, 0
  %129 = vmatprep.subr.mxu0 0.0
  %130 = vmatpush1.msra.mxu0 0.0
  %131 = vmatprep.subr.mxu0 0.0
  %132 = vmatpush1.msra.mxu0 0.0
  %133 = vmatprep.subr.mxu0 0.0
  %134 = vmatpush1.msra.mxu0 0.0
  %135 = vmatprep.subr.mxu0 0.0
  %136 = vmatpush1.msra.mxu0 0.0
  %137 = vmatprep.subr.mxu0 0.0
  %138 = vmatpush1.msra.mxu0 0.0
  %139 = vmatprep.subr.mxu0 0.0
  %140 = vmatpush1.msra.mxu0 0.0
  %141 = vmatprep.subr.mxu0 0.0
  %142 = vmatpush1.msra.mxu0 0.0
  %143 = vmatprep.subr.mxu0 0.0
  %144 = vmatpush1.msra.mxu0 0.0
  %145 = vmatprep.subr.mxu0 0.0
  %146 = vmatpush1.msra.mxu0 0.0
  %147 = vmatprep.subr.mxu0 0.0
  %148 = vmatpush1.msra.mxu0 0.0
  %149 = vmatprep.subr.mxu0 0.0
  %150 = vmatpush1.msra.mxu0 0.0
  %151 = vmatprep.subr.mxu0 0.0
  %152 = vmatpush1.msra.mxu0 0.0
  %153 = vmatprep.subr.mxu0 0.0
  %154 = vmatpush1.msra.mxu0 %v122
  %155 = vmatprep.subr.mxu0 0.0
  %156 = vmatpush1.msra.mxu0 %v121
  %157 = vmatprep.subr.mxu0 0.0
  %158 = vmatpush1.msra.mxu0 %v120
  %159 = vmatprep.subr.mxu0 0.0
  %160 = vmatpush1.msra.mxu0 %v119
  %161 = vmatprep.subr.mxu0 0.0
  %162 = vmatpush2.msra.mxu0 0.0
  %163 = vmatprep.subr.mxu0 0.0
  %164 = vmatpush2.msra.mxu0 0.0
  %165 = vmatprep.subr.mxu0 0.0
  %166 = vmatpush2.msra.mxu0 0.0
  %167 = vmatprep.subr.mxu0 0.0
  %168 = vmatpush2.msra.mxu0 0.0
  %169 = vmatprep.subr.mxu0 0.0
  %170 = vmatpush2.msra.mxu0 0.0
  %171 = vmatprep.subr.mxu0 0.0
  %172 = vmatpush2.msra.mxu0 0.0
  %173 = vmatprep.subr.mxu0 0.0
  %174 = vmatpush2.msra.mxu0 0.0
  %175 = vmatprep.subr.mxu0 0.0
  %176 = vmatpush2.msra.mxu0 0.0
  %177 = vmatprep.subr.mxu0 0.0
  %178 = vmatpush2.msra.mxu0 0.0
  %179 = vmatprep.subr.mxu0 0.0
  %180 = vmatpush2.msra.mxu0 0.0
  %181 = vmatprep.subr.mxu0 0.0
  %182 = vmatpush2.msra.mxu0 0.0
  %183 = vmatprep.subr.mxu0 0.0
  %184 = vmatpush2.msra.mxu0 0.0
  %185 = vmatprep.subr.mxu0 0.0
  %186 = vmatpush2.msra.mxu0 0.0
  %187 = vmatprep.subr.mxu0 0.0
  %188 = vmatpush2.msra.mxu0 0.0
  %189 = vmatprep.subr.mxu0 0.0
  %190 = vmatpush2.msra.mxu0 0.0
  %191 = vmatprep.subr.mxu0 0.0
  %192 = vmatpush2.msra.mxu0 0.0
  %193 = vmatprep.mubr.f32.mxu0 0.0
  %194 = vmatmul.mubr.f32.gmra.mxu0 %v124
  %v195 = vpop.f32.mrf.mxu0
  %v196 = vadd.f32 0.0, %v195
  %v197 = vpop.f32.mrf.mxu0
  %198 = vmatprep.mubr.f32.mxu0 0.0
  %199 = vmatmul.mubr.f32.gmra.mxu0 %v127
  %v200 = vpop.f32.mrf.mxu0
  %v201 = vadd.f32 0.0, %v200
  %v202 = vpop.f32.mrf.mxu0
  %203 = vdwg.mxu0
  %s204 = sld [smem:[#allocation2]]
  %v205 = vstv %s204
  %v206 = vadd.f32 %v98, %v205
  %v207 = vadd.f32 %v103, %v205
  %v208 = vmul.f32 %v115, 0.5
  %v209 = vmul.f32 %v116, 0.5
  %v210 = vadd.f32 %v206, %v208
  %v211 = vadd.f32 %v207, %v209
  %v212 = vsub.f32 %v210, %v196
  %v213 = vsub.f32 %v211, %v201
  %vm214 = vcmask 7168
  %215 = vst.msk [vmem:[%s4] sm:$0xff] %vm214, %v212
  %216 = vst.msk [vmem:[%s4 + $0x8] sm:$0xff] %vm214, %v213
  // Predicated region
  $region18: #{factorization_machine.1} parent=0 // pred_check
    _
  $region19: #{factorization_machine.1} parent=0 // pred_check_branch
    %218 = sbr.rel (0) target = $region21
  $region20: #{factorization_machine.1} parent=0 // pred_region
    _
  $region21: #{factorization_machine.1} parent=0 // pred_fallthru
    _
  // Predicated region
  $region22: #{factorization_machine.1} parent=0 // pred_check
    _
  $region23: #{factorization_machine.1} parent=0 // pred_check_branch
    %220 = sbr.rel (0) target = $region25
  $region24: #{factorization_machine.1} parent=0 // pred_region
    _
  $region25: #{factorization_machine.1} parent=0 // pred_fallthru
    _

</llo_original>
